<compile_context>
chip_gen: v5e
topology: v5e:2x2
jax: 0.10.0
libtpu: 0.0.40
codegen_flags: <defaults>
</compile_context>

<pallas_src>
import math

import jax
import jax.numpy as jnp
from jax.experimental import pallas as pl
from jax.experimental.pallas import tpu as pltpu


# --------------------------------------------------------------------------
# In-kernel helpers
# --------------------------------------------------------------------------
def _gelu_exact(x):
    # exact erf-based gelu (matches the PyTorch reference implementation)
    return x * 0.5 * (1.0 + jax.lax.erf(x * (1.0 / math.sqrt(2.0))))


def _round_up(x, m):
    return ((x + m - 1) // m) * m


# --------------------------------------------------------------------------
# Pallas kernel: one row-tile of   gelu(x @ W + b)
# --------------------------------------------------------------------------
def bert_intermediate_kernel(x_ref, w_ref, b_ref, o_ref):
    # x_ref: (bm, H) f32 activation tile
    # w_ref: (H, I)  bf16 weight (VMEM-resident across the whole grid)
    # b_ref: (1, I)  f32 bias    (VMEM-resident across the whole grid)
    # o_ref: (bm, I) f32 output tile
    x_bf16 = x_ref[...].astype(jnp.bfloat16)          # MXU-native input dtype
    acc = jnp.dot(x_bf16, w_ref[...],
                  preferred_element_type=jnp.float32)  # f32 accumulation
    y = acc + b_ref[...]                               # bias add in f32
    o_ref[...] = _gelu_exact(y).astype(o_ref.dtype)    # exact GELU in f32


# --------------------------------------------------------------------------
# Wrapper: tiling, padding, BlockSpecs, compiler params
# --------------------------------------------------------------------------
def bert_intermediate_forward(hidden_states, weight, bias, *, block_m=256):
    """Forward pass of BertIntermediate.

    hidden_states: (..., H) float32
    weight:        (H, I)   float32 (cast to bf16 once here)
    bias:          (I,)     float32
    returns:       (..., I) float32
    """
    *lead, H = hidden_states.shape
    I = weight.shape[1]

    x = hidden_states.reshape(-1, H).astype(jnp.float32)
    M = x.shape[0]

    # Row tile: sublane-aligned (multiple of 8), capped by the (padded) row count.
    bm = min(block_m, _round_up(M, 8))
    Mp = _round_up(M, bm)
    if Mp != M:
        x = jnp.pad(x, ((0, Mp - M), (0, 0)))

    w_bf16 = weight.astype(jnp.bfloat16)      # halves weight DMA / VMEM residency
    b2 = bias.reshape(1, I).astype(jnp.float32)

    grid = (Mp // bm,)

    # Per-step VMEM budget: resident bf16 weight + f32 bias + double-buffered
    # f32 input/output tiles, plus ~50% headroom for compiler temporaries.
    est = (H * I * 2 + I * 4
           + 2 * bm * H * 4
           + 2 * bm * I * 4)
    vmem_limit = min(48 * 1024 * 1024, max(int(est * 1.5) + (1 << 20),
                                           16 * 1024 * 1024))

    out = pl.pallas_call(
        bert_intermediate_kernel,
        out_shape=jax.ShapeDtypeStruct((Mp, I), jnp.float32),
        grid=grid,
        in_specs=[
            pl.BlockSpec((bm, H), lambda i: (i, 0)),   # activation row tile
            pl.BlockSpec((H, I), lambda i: (0, 0)),    # weight: resident
            pl.BlockSpec((1, I), lambda i: (0, 0)),    # bias:   resident
        ],
        out_specs=pl.BlockSpec((bm, I), lambda i: (i, 0)),
        compiler_params=pltpu.CompilerParams(
            dimension_semantics=("parallel",),         # megacore on v7x
            vmem_limit_bytes=vmem_limit,
        ),
    )(x, w_bf16, b2)

    out = out[:M]
    return out.reshape(*lead, I)


# --------------------------------------------------------------------------
# Pure-JAX reference (f32 end-to-end) for a correctness check
# --------------------------------------------------------------------------
def bert_intermediate_reference(hidden_states, weight, bias):
    y = jnp.einsum('...h,hi->...i', hidden_states.astype(jnp.float32),
                   weight.astype(jnp.float32)) + bias.astype(jnp.float32)
    return _gelu_exact(y)


# --------------------------------------------------------------------------
# Demo / self-test
# --------------------------------------------------------------------------
if __name__ == "__main__":
    # Small but lane-dense config (H, I multiples of 128) consistent with the
    # BERT-style module: intermediate_size = 4 * hidden_size.
    B, S = 2, 8
    HIDDEN = 128
    INTERMEDIATE = 512

    root = jax.random.PRNGKey(0)
    k_x, k_w, k_b = jax.random.split(root, 3)

    hidden_states = jax.random.normal(k_x, (B, S, HIDDEN), jnp.float32)
    weight = jax.random.normal(k_w, (HIDDEN, INTERMEDIATE), jnp.float32) * 0.02
    bias = jax.random.normal(k_b, (INTERMEDIATE,), jnp.float32) * 0.02

    out = bert_intermediate_forward(hidden_states, weight, bias, block_m=256)
    out = jax.block_until_ready(out)

    ref = jax.block_until_ready(
        bert_intermediate_reference(hidden_states, weight, bias))

    assert out.shape == (B, S, INTERMEDIATE)
    assert bool(jnp.all(jnp.isfinite(out)))
    # bf16 matmul inputs + f32 accumulation => small relative error vs f32 ref.
    max_err = float(jnp.max(jnp.abs(out - ref)))
    assert max_err < 2e-2, f"max abs error {max_err} too large"

    print("KERNEL_OK")
</pallas_src>

<mosaic_0001>
module attributes {stable_mosaic.version = 11 : i64} {
  func.func @bert_intermediate_kernel(%arg0: i32, %arg1: memref<16x128xf32, #tpu.memory_space<vmem>>, %arg2: memref<128x512xbf16, #tpu.memory_space<vmem>>, %arg3: memref<1x512xf32, #tpu.memory_space<vmem>>, %arg4: memref<16x512xf32, #tpu.memory_space<vmem>>) attributes {dimension_semantics = [#tpu.dimension_semantics<parallel>], iteration_bounds = array<i64: 1>, scalar_prefetch = 0 : i64, scratch_operands = 0 : i64, tpu.core_type = #tpu.core_type<tc>, window_params = [{transform_indices = @transform_0, window_bounds = array<i64: 16, 128>}, {pipeline_mode = #tpu.pipeline_mode<synchronous>, transform_indices = @transform_1, window_bounds = array<i64: 128, 512>}, {pipeline_mode = #tpu.pipeline_mode<synchronous>, transform_indices = @transform_2, window_bounds = array<i64: 1, 512>}, {transform_indices = @transform_3, window_bounds = array<i64: 16, 512>}]} {
    %c0 = arith.constant 0 : index
    %c0_0 = arith.constant 0 : index
    %0 = vector.load %arg1[%c0, %c0_0] : memref<16x128xf32, #tpu.memory_space<vmem>>, vector<16x128xf32>
    %1 = arith.truncf %0 : vector<16x128xf32> to vector<16x128xbf16>
    %c0_1 = arith.constant 0 : index
    %c0_2 = arith.constant 0 : index
    %2 = vector.load %arg2[%c0_1, %c0_2] : memref<128x512xbf16, #tpu.memory_space<vmem>>, vector<128x512xbf16>
    %cst = arith.constant dense<0.000000e+00> : vector<16x512xf32>
    %3 = tpu.matmul %1, %2, %cst {dimension_numbers = #tpu.dot_dimension_numbers<[1], [0], [0], [1], [0, 0, 1, 1], [], []>} : vector<16x128xbf16>, vector<128x512xbf16>, vector<16x512xf32> -> vector<16x512xf32>
    %c0_3 = arith.constant 0 : index
    %c0_4 = arith.constant 0 : index
    %4 = vector.load %arg3[%c0_3, %c0_4] : memref<1x512xf32, #tpu.memory_space<vmem>>, vector<1x512xf32>
    %5 = vector.broadcast %4 : vector<1x512xf32> to vector<16x512xf32>
    %6 = arith.addf %3, %5 : vector<16x512xf32>
    %cst_5 = arith.constant 5.000000e-01 : f32
    %7 = vector.broadcast %cst_5 : f32 to vector<16x512xf32>
    %8 = arith.mulf %6, %7 : vector<16x512xf32>
    %cst_6 = arith.constant 0.707106769 : f32
    %9 = vector.broadcast %cst_6 : f32 to vector<16x512xf32>
    %10 = arith.mulf %6, %9 : vector<16x512xf32>
    %11 = math.erf %10 : vector<16x512xf32>
    %cst_7 = arith.constant 1.000000e+00 : f32
    %12 = vector.broadcast %cst_7 : f32 to vector<16x512xf32>
    %13 = arith.addf %12, %11 : vector<16x512xf32>
    %14 = arith.mulf %8, %13 : vector<16x512xf32>
    %c0_8 = arith.constant 0 : index
    %c0_9 = arith.constant 0 : index
    %15 = vector.load %arg4[%c0_8, %c0_9] : memref<16x512xf32, #tpu.memory_space<vmem>>, vector<16x512xf32>
    tpu.vector_store %arg4[%c0_8, %c0_9], %14 {strides = array<i32>} : memref<16x512xf32, #tpu.memory_space<vmem>>, vector<16x512xf32>,
    return
  }
  func.func @transform_0(%arg0: i32) -> (i32, i32) {
    %c0_i32 = arith.constant 0 : i32
    %c0_i32_0 = arith.constant 0 : i32
    return %arg0, %c0_i32 : i32, i32
  }
  func.func @transform_1(%arg0: i32) -> (i32, i32) {
    %c0_i32 = arith.constant 0 : i32
    %c0_i32_0 = arith.constant 0 : i32
    %c0_i32_1 = arith.constant 0 : i32
    return %c0_i32, %c0_i32_0 : i32, i32
  }
  func.func @transform_2(%arg0: i32) -> (i32, i32) {
    %c0_i32 = arith.constant 0 : i32
    %c0_i32_0 = arith.constant 0 : i32
    %c0_i32_1 = arith.constant 0 : i32
    return %c0_i32, %c0_i32_0 : i32, i32
  }
  func.func @transform_3(%arg0: i32) -> (i32, i32) {
    %c0_i32 = arith.constant 0 : i32
    %c0_i32_0 = arith.constant 0 : i32
    return %arg0, %c0_i32 : i32, i32
  }
}

</mosaic_0001>

<llo_original>
// kernel: tpu_custom_call.1
$region0: #{tpu_custom_call.1}
  #allocation0 [shape = 'u32[]', space=smem, size = 0x4, offset = 0x4, fixed_abs, tag = 'smem constant byte address 0x4 - core index']
  #allocation1 [shape = 'u32[72,128]{1,0:T(1,128)}', space=vmem, size = 0x9000, scoped, tag = 'internal scratch']
  %s0 = inlined_call_operand.hbm [shape: f32[16,128], index: 0, kind: input, shape index: {}]
  %s1 = inlined_call_operand.hbm [shape: bf16[128,512], index: 1, kind: input, shape index: {}]
  %s2 = inlined_call_operand.hbm [shape: f32[1,512], index: 2, kind: input, shape index: {}]
  %s3 = inlined_call_operand.hbm [shape: f32[16,512], index: 3, kind: output, shape index: {}]
  %s4 = sld [smem:[#allocation0]]
  $region34: #{tpu_custom_call.1} parent=0
    _
  %s6 = ssub.s32 1, %s4
  %s7 = scalar_select 0, %s6, %s4
  $region1: #{tpu_custom_call.1} parent=0
    #allocation2 [shape = 'u8[8192]{0}', space=vmem, size = 0x2000, scoped, tag = 'input window, operand 0, single buffered']
    #allocation3 [shape = 's32[1]{0}', space=sflag, size = 0x4, scoped, tag = 'scoped memory for tpu_custom_call.1']
    #allocation4 [shape = 's32[1]{0}', space=sflag, size = 0x4, scoped, tag = 'scoped memory for tpu_custom_call.1']
    #allocation5 [shape = 'u8[131072]{0}', space=vmem, size = 0x20000, scoped, tag = 'input window, operand 1, single buffered']
    #allocation6 [shape = 's32[1]{0}', space=sflag, size = 0x4, scoped, tag = 'scoped memory for tpu_custom_call.1']
    #allocation7 [shape = 'u8[2048]{0}', space=vmem, size = 0x800, scoped, tag = 'input window, operand 2, single buffered']
    #allocation8 [shape = 'u8[32768]{0}', space=vmem, size = 0x8000, scoped, tag = 'output window, operand 0, single buffered']
    %8 = vsyncpa [#allocation3], 0
    %9 = vsyncpa [#allocation6], 0
    %10 = vsyncpa [#allocation4], 0
    // Predicated region
    $region2: #{tpu_custom_call.1} parent=1 // pred_check
      _
    $region3: #{tpu_custom_call.1} parent=1 // pred_check_branch
      %12 = sbr.rel (0) target = $region5
    $region4: #{tpu_custom_call.1} parent=1 // pred_region
      %14 = vsyncadd [#allocation3], 0
      %s15 = sshll.u32 %s0, 4
      %s16 = int_to_ptr.hbm [resolvable:$true] %s15
      %s17 = sshll.u32 [#allocation2], 4
      %s18 = int_to_ptr.vmem [resolvable:$true] %s17
      %23 = dma.hbm_to_vmem [thread:$0]  %s16, 256, %s18, [#allocation3], 128, 128, 8
    $region5: #{tpu_custom_call.1} parent=1 // pred_fallthru
      _
    // Predicated region
    $region6: #{tpu_custom_call.1} parent=1 // pred_check
      _
    $region7: #{tpu_custom_call.1} parent=1 // pred_check_branch
      %25 = sbr.rel (0) target = $region9
    $region8: #{tpu_custom_call.1} parent=1 // pred_region
      %27 = vsyncadd [#allocation6], 0
      %s28 = sshll.u32 %s1, 4
      %s29 = int_to_ptr.hbm [resolvable:$true] %s28
      %s30 = sshll.u32 [#allocation5], 4
      %s31 = int_to_ptr.vmem [resolvable:$true] %s30
      %36 = dma.hbm_to_vmem [thread:$0]  %s29, 4096, %s31, [#allocation6], 256, 256, 16
    $region9: #{tpu_custom_call.1} parent=1 // pred_fallthru
      _
    // Predicated region
    $region10: #{tpu_custom_call.1} parent=1 // pred_check
      _
    $region11: #{tpu_custom_call.1} parent=1 // pred_check_branch
      %38 = sbr.rel (0) target = $region13
    $region12: #{tpu_custom_call.1} parent=1 // pred_region
      %40 = vsyncadd [#allocation6], 0
      %s42 = sshll.u32 %s2, 4
      %s43 = int_to_ptr.hbm [resolvable:$true] %s42
      %s44 = sshll.u32 [#allocation7], 4
      %s45 = int_to_ptr.vmem [resolvable:$true] %s44
      %47 = dma.hbm_to_vmem [thread:$0]  %s43, 64, %s45, [#allocation6]
    $region13: #{tpu_custom_call.1} parent=1 // pred_fallthru
      _
    // Predicated region
    $region14: #{tpu_custom_call.1} parent=1 // pred_check
      _
    $region15: #{tpu_custom_call.1} parent=1 // pred_check_branch
      %49 = sbr.rel (0) target = $region17
    $region16: #{tpu_custom_call.1} parent=1 // pred_region
      %51 = dma.done [#allocation3], 256
    $region17: #{tpu_custom_call.1} parent=1 // pred_fallthru
      _
    // Predicated region
    $region18: #{tpu_custom_call.1} parent=1 // pred_check
      _
    $region19: #{tpu_custom_call.1} parent=1 // pred_check_branch
      %53 = sbr.rel (0) target = $region21
    $region20: #{tpu_custom_call.1} parent=1 // pred_region
      %55 = dma.done [#allocation6], 4096
    $region21: #{tpu_custom_call.1} parent=1 // pred_fallthru
      _
    // Predicated region
    $region22: #{tpu_custom_call.1} parent=1 // pred_check
      _
    $region23: #{tpu_custom_call.1} parent=1 // pred_check_branch
      %57 = sbr.rel (0) target = $region25
    $region24: #{tpu_custom_call.1} parent=1 // pred_region
      %59 = dma.done [#allocation6], 64
    $region25: #{tpu_custom_call.1} parent=1 // pred_fallthru
      _
    %v60 = vld [vmem:[#allocation2] sm:$0xff]
    %v61 = vld [vmem:[#allocation2 + $0x8] sm:$0xff]
    %v62 = vpack.c.bf16 %v61, %v60
    %v63 = vld [vmem:[#allocation5] sm:$0xff]
    %v64 = vld [vmem:[#allocation5 + $0x8] sm:$0xff]
    %v65 = vld [vmem:[#allocation5 + $0x10] sm:$0xff]
    %v66 = vld [vmem:[#allocation5 + $0x18] sm:$0xff]
    %v67 = vld [vmem:[#allocation5 + $0x20] sm:$0xff]
    %v68 = vld [vmem:[#allocation5 + $0x28] sm:$0xff]
    %v69 = vld [vmem:[#allocation5 + $0x30] sm:$0xff]
    %v70 = vld [vmem:[#allocation5 + $0x38] sm:$0xff]
    %v71 = vld [vmem:[#allocation5 + $0x40] sm:$0xff]
    %v72 = vld [vmem:[#allocation5 + $0x48] sm:$0xff]
    %v73 = vld [vmem:[#allocation5 + $0x50] sm:$0xff]
    %v74 = vld [vmem:[#allocation5 + $0x58] sm:$0xff]
    %v75 = vld [vmem:[#allocation5 + $0x60] sm:$0xff]
    %v76 = vld [vmem:[#allocation5 + $0x68] sm:$0xff]
    %v77 = vld [vmem:[#allocation5 + $0x70] sm:$0xff]
    %v78 = vld [vmem:[#allocation5 + $0x78] sm:$0xff]
    %v79 = vld [vmem:[#allocation5 + $0x80] sm:$0xff]
    %v80 = vld [vmem:[#allocation5 + $0x88] sm:$0xff]
    %v81 = vld [vmem:[#allocation5 + $0x90] sm:$0xff]
    %v82 = vld [vmem:[#allocation5 + $0x98] sm:$0xff]
    %v83 = vld [vmem:[#allocation5 + $0xa0] sm:$0xff]
    %v84 = vld [vmem:[#allocation5 + $0xa8] sm:$0xff]
    %v85 = vld [vmem:[#allocation5 + $0xb0] sm:$0xff]
    %v86 = vld [vmem:[#allocation5 + $0xb8] sm:$0xff]
    %v87 = vld [vmem:[#allocation5 + $0xc0] sm:$0xff]
    %v88 = vld [vmem:[#allocation5 + $0xc8] sm:$0xff]
    %v89 = vld [vmem:[#allocation5 + $0xd0] sm:$0xff]
    %v90 = vld [vmem:[#allocation5 + $0xd8] sm:$0xff]
    %v91 = vld [vmem:[#allocation5 + $0xe0] sm:$0xff]
    %v92 = vld [vmem:[#allocation5 + $0xe8] sm:$0xff]
    %v93 = vld [vmem:[#allocation5 + $0xf0] sm:$0xff]
    %v94 = vld [vmem:[#allocation5 + $0xf8] sm:$0xff]
    %v95 = vld [vmem:[#allocation7] sm:$0xf]
    %v97 = vperm.slane %v95, 0
    %v98 = vperm.slane %v95, 1
    %v99 = vperm.slane %v95, 2
    %v100 = vperm.slane %v95, 3
    %v137 = vunpack.c.l.b16 %v63
    %v138 = vunpack.c.h.b16 %v63
    %v139 = vunpack.c.l.b16 %v64
    %v140 = vunpack.c.h.b16 %v64
    %v141 = vunpack.c.l.b16 %v65
    %v142 = vunpack.c.h.b16 %v65
    %v143 = vunpack.c.l.b16 %v66
    %v144 = vunpack.c.h.b16 %v66
    %v145 = vunpack.c.l.b16 %v67
    %v146 = vunpack.c.h.b16 %v67
    %v147 = vunpack.c.l.b16 %v68
    %v148 = vunpack.c.h.b16 %v68
    %v149 = vunpack.c.l.b16 %v69
    %v150 = vunpack.c.h.b16 %v69
    %v151 = vunpack.c.l.b16 %v70
    %v152 = vunpack.c.h.b16 %v70
    %v153 = vunpack.c.l.b16 %v71
    %v154 = vunpack.c.h.b16 %v71
    %v155 = vunpack.c.l.b16 %v72
    %v156 = vunpack.c.h.b16 %v72
    %v157 = vunpack.c.l.b16 %v73
    %v158 = vunpack.c.h.b16 %v73
    %v159 = vunpack.c.l.b16 %v74
    %v160 = vunpack.c.h.b16 %v74
    %v161 = vunpack.c.l.b16 %v75
    %v162 = vunpack.c.h.b16 %v75
    %v163 = vunpack.c.l.b16 %v76
    %v164 = vunpack.c.h.b16 %v76
    %v165 = vunpack.c.l.b16 %v77
    %v166 = vunpack.c.h.b16 %v77
    %v167 = vunpack.c.l.b16 %v78
    %v168 = vunpack.c.h.b16 %v78
    %v169 = vunpack.c.l.b16 %v79
    %v170 = vunpack.c.h.b16 %v79
    %v171 = vunpack.c.l.b16 %v80
    %v172 = vunpack.c.h.b16 %v80
    %v173 = vunpack.c.l.b16 %v81
    %v174 = vunpack.c.h.b16 %v81
    %v175 = vunpack.c.l.b16 %v82
    %v176 = vunpack.c.h.b16 %v82
    %v177 = vunpack.c.l.b16 %v83
    %v178 = vunpack.c.h.b16 %v83
    %v179 = vunpack.c.l.b16 %v84
    %v180 = vunpack.c.h.b16 %v84
    %v181 = vunpack.c.l.b16 %v85
    %v182 = vunpack.c.h.b16 %v85
    %v183 = vunpack.c.l.b16 %v86
    %v184 = vunpack.c.h.b16 %v86
    %v185 = vunpack.c.l.b16 %v87
    %v186 = vunpack.c.h.b16 %v87
    %v187 = vunpack.c.l.b16 %v88
    %v188 = vunpack.c.h.b16 %v88
    %v189 = vunpack.c.l.b16 %v89
    %v190 = vunpack.c.h.b16 %v89
    %v191 = vunpack.c.l.b16 %v90
    %v192 = vunpack.c.h.b16 %v90
    %v193 = vunpack.c.l.b16 %v91
    %v194 = vunpack.c.h.b16 %v91
    %v195 = vunpack.c.l.b16 %v92
    %v196 = vunpack.c.h.b16 %v92
    %v197 = vunpack.c.l.b16 %v93
    %v198 = vunpack.c.h.b16 %v93
    %v199 = vunpack.c.l.b16 %v94
    %v200 = vunpack.c.h.b16 %v94
    %v201 = vpack.c.b16 %v141, %v137
    %v202 = vpack.c.b16 %v142, %v138
    %v203 = vpack.c.b16 %v143, %v139
    %v204 = vpack.c.b16 %v144, %v140
    %v205 = vpack.c.b16 %v149, %v145
    %v206 = vpack.c.b16 %v150, %v146
    %v207 = vpack.c.b16 %v151, %v147
    %v208 = vpack.c.b16 %v152, %v148
    %v209 = vpack.c.b16 %v157, %v153
    %v210 = vpack.c.b16 %v158, %v154
    %v211 = vpack.c.b16 %v159, %v155
    %v212 = vpack.c.b16 %v160, %v156
    %v213 = vpack.c.b16 %v165, %v161
    %v214 = vpack.c.b16 %v166, %v162
    %v215 = vpack.c.b16 %v167, %v163
    %v216 = vpack.c.b16 %v168, %v164
    %v217 = vpack.c.b16 %v173, %v169
    %v218 = vpack.c.b16 %v174, %v170
    %v219 = vpack.c.b16 %v175, %v171
    %v220 = vpack.c.b16 %v176, %v172
    %v221 = vpack.c.b16 %v181, %v177
    %v222 = vpack.c.b16 %v182, %v178
    %v223 = vpack.c.b16 %v183, %v179
    %v224 = vpack.c.b16 %v184, %v180
    %v225 = vpack.c.b16 %v189, %v185
    %v226 = vpack.c.b16 %v190, %v186
    %v227 = vpack.c.b16 %v191, %v187
    %v228 = vpack.c.b16 %v192, %v188
    %v229 = vpack.c.b16 %v197, %v193
    %v230 = vpack.c.b16 %v198, %v194
    %v231 = vpack.c.b16 %v199, %v195
    %v232 = vpack.c.b16 %v200, %v196
    %265 = vmatpush.bf16.msra.mxu0 %v229
    %266 = vmatpush.bf16.msra.mxu0 %v225
    %267 = vmatpush.bf16.msra.mxu0 %v221
    %268 = vmatpush.bf16.msra.mxu0 %v217
    %269 = vmatpush.bf16.msra.mxu0 %v213
    %270 = vmatpush.bf16.msra.mxu0 %v209
    %271 = vmatpush.bf16.msra.mxu0 %v205
    %272 = vmatpush.bf16.msra.mxu0 %v201
    %273 = vmatmul.bf16.gmra.mxu0 %v62
    %v274 = vpop.f32.mrf.mxu0
    %v275 = vadd.f32 %v97, %v274
    %v276 = vpop.f32.mrf.mxu0
    %v277 = vadd.f32 %v97, %v276
    %278 = vdwg.mxu0
    %279 = vmatpush.bf16.msra.mxu0 %v230
    %280 = vmatpush.bf16.msra.mxu0 %v226
    %281 = vmatpush.bf16.msra.mxu0 %v222
    %282 = vmatpush.bf16.msra.mxu0 %v218
    %283 = vmatpush.bf16.msra.mxu0 %v214
    %284 = vmatpush.bf16.msra.mxu0 %v210
    %285 = vmatpush.bf16.msra.mxu0 %v206
    %286 = vmatpush.bf16.msra.mxu0 %v202
    %287 = vmatmul.bf16.gmra.mxu0 %v62
    %v288 = vpop.f32.mrf.mxu0
    %v289 = vadd.f32 %v98, %v288
    %v290 = vpop.f32.mrf.mxu0
    %v291 = vadd.f32 %v98, %v290
    %292 = vdwg.mxu0
    %293 = vmatpush.bf16.msra.mxu0 %v231
    %294 = vmatpush.bf16.msra.mxu0 %v227
    %295 = vmatpush.bf16.msra.mxu0 %v223
    %296 = vmatpush.bf16.msra.mxu0 %v219
    %297 = vmatpush.bf16.msra.mxu0 %v215
    %298 = vmatpush.bf16.msra.mxu0 %v211
    %299 = vmatpush.bf16.msra.mxu0 %v207
    %300 = vmatpush.bf16.msra.mxu0 %v203
    %301 = vmatmul.bf16.gmra.mxu0 %v62
    %v302 = vpop.f32.mrf.mxu0
    %v303 = vadd.f32 %v99, %v302
    %v304 = vpop.f32.mrf.mxu0
    %v305 = vadd.f32 %v99, %v304
    %306 = vdwg.mxu0
    %307 = vmatpush.bf16.msra.mxu0 %v232
    %308 = vmatpush.bf16.msra.mxu0 %v228
    %309 = vmatpush.bf16.msra.mxu0 %v224
    %310 = vmatpush.bf16.msra.mxu0 %v220
    %311 = vmatpush.bf16.msra.mxu0 %v216
    %312 = vmatpush.bf16.msra.mxu0 %v212
    %313 = vmatpush.bf16.msra.mxu0 %v208
    %314 = vmatpush.bf16.msra.mxu0 %v204
    %315 = vmatmul.bf16.gmra.mxu0 %v62
    %v316 = vpop.f32.mrf.mxu0
    %v317 = vadd.f32 %v100, %v316
    %v318 = vpop.f32.mrf.mxu0
    %v319 = vadd.f32 %v100, %v318
    %320 = vdwg.mxu0
    %v321 = vmul.f32 %v275, 0.5
    %v322 = vmul.f32 %v289, 0.5
    %v323 = vmul.f32 %v303, 0.5
    %v324 = vmul.f32 %v317, 0.5
    %v325 = vmul.f32 %v277, 0.5
    %v326 = vmul.f32 %v291, 0.5
    %v327 = vmul.f32 %v305, 0.5
    %v328 = vmul.f32 %v319, 0.5
    %v329 = vmul.f32 %v275, 0.70710677
    %v330 = vmul.f32 %v289, 0.70710677
    %v331 = vmul.f32 %v303, 0.70710677
    %v332 = vmul.f32 %v317, 0.70710677
    %v333 = vmul.f32 %v277, 0.70710677
    %v334 = vmul.f32 %v291, 0.70710677
    %v335 = vmul.f32 %v305, 0.70710677
    %v336 = vmul.f32 %v319, 0.70710677
    %v337 = vmul.f32 %v329, %v329
    %v338 = vmin.f32 16.0, %v337
    %v339 = vmul.f32 %v338, 2.1237322e-06
    %v340 = vadd.f32 %v339, 0.00028619796
    %v341 = vmul.f32 %v338, %v340
    %v342 = vadd.f32 %v341, 0.0036580483
    %v343 = vmul.f32 %v338, %v342
    %v344 = vadd.f32 %v343, 0.05243302
    %v345 = vmul.f32 %v338, %v344
    %v346 = vadd.f32 %v345, 0.18741608
    %v347 = vmul.f32 %v338, %v346
    %v348 = vadd.f32 %v347, 1.1283791
    %v349 = vmul.f32 %v329, %v348
    %v350 = vmul.f32 %v338, 3.8918573e-05
    %v351 = vadd.f32 %v350, 0.001143296
    %v352 = vmul.f32 %v338, %v351
    %v353 = vadd.f32 %v352, 0.014752088
    %v354 = vmul.f32 %v338, %v353
    %v355 = vadd.f32 %v354, 0.112945676
    %v356 = vmul.f32 %v338, %v355
    %v357 = vadd.f32 %v356, 0.4994258
    %v358 = vmul.f32 %v338, %v357
    %v359 = vadd.f32 %v358, 1.0
    %v360 = vrcp.pop %v359
    %v361 = vmul.f32 %v359, %v360
    %v362 = vsub.f32 1.0, %v361
    %v363 = vmul.f32 %v360, %v362
    %v364 = vadd.f32 %v360, %v363
    %vm365 = vweird.f32 %v359
    %vm366 = vweird.f32 %v360
    %vm367 = vmor %vm365, %vm366
    %v368 = vsel %vm367, %v360, %v364
    %v369 = vand.u32 2147483647, %v359
    %vm370 = vcmp.eq.f32.partialorder %v369, 8.507059e+37
    %v371 = vand.u32 %v359, 2147483648
    %v372 = vor.u32 1.1754944e-38, %v371
    %v373 = vsel %vm370, %v372, %v368
    %v374 = vmul.f32 %v349, %v373
    %v375 = vmin.f32 %v374, 1.0
    %v376 = vmax.f32 %v375, -1.0
    %v377 = vmul.f32 %v330, %v330
    %v378 = vmin.f32 16.0, %v377
    %v379 = vmul.f32 %v378, 2.1237322e-06
    %v380 = vadd.f32 %v379, 0.00028619796
    %v381 = vmul.f32 %v378, %v380
    %v382 = vadd.f32 %v381, 0.0036580483
    %v383 = vmul.f32 %v378, %v382
    %v384 = vadd.f32 %v383, 0.05243302
    %v385 = vmul.f32 %v378, %v384
    %v386 = vadd.f32 %v385, 0.18741608
    %v387 = vmul.f32 %v378, %v386
    %v388 = vadd.f32 %v387, 1.1283791
    %v389 = vmul.f32 %v330, %v388
    %v390 = vmul.f32 %v378, 3.8918573e-05
    %v391 = vadd.f32 %v390, 0.001143296
    %v392 = vmul.f32 %v378, %v391
    %v393 = vadd.f32 %v392, 0.014752088
    %v394 = vmul.f32 %v378, %v393
    %v395 = vadd.f32 %v394, 0.112945676
    %v396 = vmul.f32 %v378, %v395
    %v397 = vadd.f32 %v396, 0.4994258
    %v398 = vmul.f32 %v378, %v397
    %v399 = vadd.f32 %v398, 1.0
    %v400 = vrcp.pop %v399
    %v401 = vmul.f32 %v399, %v400
    %v402 = vsub.f32 1.0, %v401
    %v403 = vmul.f32 %v400, %v402
    %v404 = vadd.f32 %v400, %v403
    %vm405 = vweird.f32 %v399
    %vm406 = vweird.f32 %v400
    %vm407 = vmor %vm405, %vm406
    %v408 = vsel %vm407, %v400, %v404
    %v409 = vand.u32 2147483647, %v399
    %vm410 = vcmp.eq.f32.partialorder %v409, 8.507059e+37
    %v411 = vand.u32 %v399, 2147483648
    %v412 = vor.u32 1.1754944e-38, %v411
    %v413 = vsel %vm410, %v412, %v408
    %v414 = vmul.f32 %v389, %v413
    %v415 = vmin.f32 %v414, 1.0
    %v416 = vmax.f32 %v415, -1.0
    %v417 = vmul.f32 %v331, %v331
    %v418 = vmin.f32 16.0, %v417
    %v419 = vmul.f32 %v418, 2.1237322e-06
    %v420 = vadd.f32 %v419, 0.00028619796
    %v421 = vmul.f32 %v418, %v420
    %v422 = vadd.f32 %v421, 0.0036580483
    %v423 = vmul.f32 %v418, %v422
    %v424 = vadd.f32 %v423, 0.05243302
    %v425 = vmul.f32 %v418, %v424
    %v426 = vadd.f32 %v425, 0.18741608
    %v427 = vmul.f32 %v418, %v426
    %v428 = vadd.f32 %v427, 1.1283791
    %v429 = vmul.f32 %v331, %v428
    %v430 = vmul.f32 %v418, 3.8918573e-05
    %v431 = vadd.f32 %v430, 0.001143296
    %v432 = vmul.f32 %v418, %v431
    %v433 = vadd.f32 %v432, 0.014752088
    %v434 = vmul.f32 %v418, %v433
    %v435 = vadd.f32 %v434, 0.112945676
    %v436 = vmul.f32 %v418, %v435
    %v437 = vadd.f32 %v436, 0.4994258
    %v438 = vmul.f32 %v418, %v437
    %v439 = vadd.f32 %v438, 1.0
    %v440 = vrcp.pop %v439
    %v441 = vmul.f32 %v439, %v440
    %v442 = vsub.f32 1.0, %v441
    %v443 = vmul.f32 %v440, %v442
    %v444 = vadd.f32 %v440, %v443
    %vm445 = vweird.f32 %v439
    %vm446 = vweird.f32 %v440
    %vm447 = vmor %vm445, %vm446
    %v448 = vsel %vm447, %v440, %v444
    %v449 = vand.u32 2147483647, %v439
    %vm450 = vcmp.eq.f32.partialorder %v449, 8.507059e+37
    %v451 = vand.u32 %v439, 2147483648
    %v452 = vor.u32 1.1754944e-38, %v451
    %v453 = vsel %vm450, %v452, %v448
    %v454 = vmul.f32 %v429, %v453
    %v455 = vmin.f32 %v454, 1.0
    %v456 = vmax.f32 %v455, -1.0
    %v457 = vmul.f32 %v332, %v332
    %v458 = vmin.f32 16.0, %v457
    %v459 = vmul.f32 %v458, 2.1237322e-06
    %v460 = vadd.f32 %v459, 0.00028619796
    %v461 = vmul.f32 %v458, %v460
    %v462 = vadd.f32 %v461, 0.0036580483
    %v463 = vmul.f32 %v458, %v462
    %v464 = vadd.f32 %v463, 0.05243302
    %v465 = vmul.f32 %v458, %v464
    %v466 = vadd.f32 %v465, 0.18741608
    %v467 = vmul.f32 %v458, %v466
    %v468 = vadd.f32 %v467, 1.1283791
    %v469 = vmul.f32 %v332, %v468
    %v470 = vmul.f32 %v458, 3.8918573e-05
    %v471 = vadd.f32 %v470, 0.001143296
    %v472 = vmul.f32 %v458, %v471
    %v473 = vadd.f32 %v472, 0.014752088
    %v474 = vmul.f32 %v458, %v473
    %v475 = vadd.f32 %v474, 0.112945676
    %v476 = vmul.f32 %v458, %v475
    %v477 = vadd.f32 %v476, 0.4994258
    %v478 = vmul.f32 %v458, %v477
    %v479 = vadd.f32 %v478, 1.0
    %v480 = vrcp.pop %v479
    %v481 = vmul.f32 %v479, %v480
    %v482 = vsub.f32 1.0, %v481
    %v483 = vmul.f32 %v480, %v482
    %v484 = vadd.f32 %v480, %v483
    %vm485 = vweird.f32 %v479
    %vm486 = vweird.f32 %v480
    %vm487 = vmor %vm485, %vm486
    %v488 = vsel %vm487, %v480, %v484
    %v489 = vand.u32 2147483647, %v479
    %vm490 = vcmp.eq.f32.partialorder %v489, 8.507059e+37
    %v491 = vand.u32 %v479, 2147483648
    %v492 = vor.u32 1.1754944e-38, %v491
    %v493 = vsel %vm490, %v492, %v488
    %v494 = vmul.f32 %v469, %v493
    %v495 = vmin.f32 %v494, 1.0
    %v496 = vmax.f32 %v495, -1.0
    %v497 = vmul.f32 %v333, %v333
    %v498 = vmin.f32 16.0, %v497
    %v499 = vmul.f32 %v498, 2.1237322e-06
    %v500 = vadd.f32 %v499, 0.00028619796
    %v501 = vmul.f32 %v498, %v500
    %v502 = vadd.f32 %v501, 0.0036580483
    %v503 = vmul.f32 %v498, %v502
    %v504 = vadd.f32 %v503, 0.05243302
    %v505 = vmul.f32 %v498, %v504
    %v506 = vadd.f32 %v505, 0.18741608
    %v507 = vmul.f32 %v498, %v506
    %v508 = vadd.f32 %v507, 1.1283791
    %v509 = vmul.f32 %v333, %v508
    %v510 = vmul.f32 %v498, 3.8918573e-05
    %v511 = vadd.f32 %v510, 0.001143296
    %v512 = vmul.f32 %v498, %v511
    %v513 = vadd.f32 %v512, 0.014752088
    %v514 = vmul.f32 %v498, %v513
    %v515 = vadd.f32 %v514, 0.112945676
    %v516 = vmul.f32 %v498, %v515
    %v517 = vadd.f32 %v516, 0.4994258
    %v518 = vmul.f32 %v498, %v517
    %v519 = vadd.f32 %v518, 1.0
    %v520 = vrcp.pop %v519
    %v521 = vmul.f32 %v519, %v520
    %v522 = vsub.f32 1.0, %v521
    %v523 = vmul.f32 %v520, %v522
    %v524 = vadd.f32 %v520, %v523
    %vm525 = vweird.f32 %v519
    %vm526 = vweird.f32 %v520
    %vm527 = vmor %vm525, %vm526
    %v528 = vsel %vm527, %v520, %v524
    %v529 = vand.u32 2147483647, %v519
    %vm530 = vcmp.eq.f32.partialorder %v529, 8.507059e+37
    %v531 = vand.u32 %v519, 2147483648
    %v532 = vor.u32 1.1754944e-38, %v531
    %v533 = vsel %vm530, %v532, %v528
    %v534 = vmul.f32 %v509, %v533
    %v535 = vmin.f32 %v534, 1.0
    %v536 = vmax.f32 %v535, -1.0
    %v537 = vmul.f32 %v334, %v334
    %v538 = vmin.f32 16.0, %v537
    %v539 = vmul.f32 %v538, 2.1237322e-06
    %v540 = vadd.f32 %v539, 0.00028619796
    %v541 = vmul.f32 %v538, %v540
    %v542 = vadd.f32 %v541, 0.0036580483
    %v543 = vmul.f32 %v538, %v542
    %v544 = vadd.f32 %v543, 0.05243302
    %v545 = vmul.f32 %v538, %v544
    %v546 = vadd.f32 %v545, 0.18741608
    %v547 = vmul.f32 %v538, %v546
    %v548 = vadd.f32 %v547, 1.1283791
    %v549 = vmul.f32 %v334, %v548
    %v550 = vmul.f32 %v538, 3.8918573e-05
    %v551 = vadd.f32 %v550, 0.001143296
    %v552 = vmul.f32 %v538, %v551
    %v553 = vadd.f32 %v552, 0.014752088
    %v554 = vmul.f32 %v538, %v553
    %v555 = vadd.f32 %v554, 0.112945676
    %v556 = vmul.f32 %v538, %v555
    %v557 = vadd.f32 %v556, 0.4994258
    %v558 = vmul.f32 %v538, %v557
    %v559 = vadd.f32 %v558, 1.0
    %v560 = vrcp.pop %v559
    %v561 = vmul.f32 %v559, %v560
    %v562 = vsub.f32 1.0, %v561
    %v563 = vmul.f32 %v560, %v562
    %v564 = vadd.f32 %v560, %v563
    %vm565 = vweird.f32 %v559
    %vm566 = vweird.f32 %v560
    %vm567 = vmor %vm565, %vm566
    %v568 = vsel %vm567, %v560, %v564
    %v569 = vand.u32 2147483647, %v559
    %vm570 = vcmp.eq.f32.partialorder %v569, 8.507059e+37
    %v571 = vand.u32 %v559, 2147483648
    %v572 = vor.u32 1.1754944e-38, %v571
    %v573 = vsel %vm570, %v572, %v568
    %v574 = vmul.f32 %v549, %v573
    %v575 = vmin.f32 %v574, 1.0
    %v576 = vmax.f32 %v575, -1.0
    %v577 = vmul.f32 %v335, %v335
    %v578 = vmin.f32 16.0, %v577
    %v579 = vmul.f32 %v578, 2.1237322e-06
    %v580 = vadd.f32 %v579, 0.00028619796
    %v581 = vmul.f32 %v578, %v580
    %v582 = vadd.f32 %v581, 0.0036580483
    %v583 = vmul.f32 %v578, %v582
    %v584 = vadd.f32 %v583, 0.05243302
    %v585 = vmul.f32 %v578, %v584
    %v586 = vadd.f32 %v585, 0.18741608
    %v587 = vmul.f32 %v578, %v586
    %v588 = vadd.f32 %v587, 1.1283791
    %v589 = vmul.f32 %v335, %v588
    %v590 = vmul.f32 %v578, 3.8918573e-05
    %v591 = vadd.f32 %v590, 0.001143296
    %v592 = vmul.f32 %v578, %v591
    %v593 = vadd.f32 %v592, 0.014752088
    %v594 = vmul.f32 %v578, %v593
    %v595 = vadd.f32 %v594, 0.112945676
    %v596 = vmul.f32 %v578, %v595
    %v597 = vadd.f32 %v596, 0.4994258
    %v598 = vmul.f32 %v578, %v597
    %v599 = vadd.f32 %v598, 1.0
    %v600 = vrcp.pop %v599
    %v601 = vmul.f32 %v599, %v600
    %v602 = vsub.f32 1.0, %v601
    %v603 = vmul.f32 %v600, %v602
    %v604 = vadd.f32 %v600, %v603
    %vm605 = vweird.f32 %v599
    %vm606 = vweird.f32 %v600
    %vm607 = vmor %vm605, %vm606
    %v608 = vsel %vm607, %v600, %v604
    %v609 = vand.u32 2147483647, %v599
    %vm610 = vcmp.eq.f32.partialorder %v609, 8.507059e+37
    %v611 = vand.u32 %v599, 2147483648
    %v612 = vor.u32 1.1754944e-38, %v611
    %v613 = vsel %vm610, %v612, %v608
    %v614 = vmul.f32 %v589, %v613
    %v615 = vmin.f32 %v614, 1.0
    %v616 = vmax.f32 %v615, -1.0
    %v617 = vmul.f32 %v336, %v336
    %v618 = vmin.f32 16.0, %v617
    %v619 = vmul.f32 %v618, 2.1237322e-06
    %v620 = vadd.f32 %v619, 0.00028619796
    %v621 = vmul.f32 %v618, %v620
    %v622 = vadd.f32 %v621, 0.0036580483
    %v623 = vmul.f32 %v618, %v622
    %v624 = vadd.f32 %v623, 0.05243302
    %v625 = vmul.f32 %v618, %v624
    %v626 = vadd.f32 %v625, 0.18741608
    %v627 = vmul.f32 %v618, %v626
    %v628 = vadd.f32 %v627, 1.1283791
    %v629 = vmul.f32 %v336, %v628
    %v630 = vmul.f32 %v618, 3.8918573e-05
    %v631 = vadd.f32 %v630, 0.001143296
    %v632 = vmul.f32 %v618, %v631
    %v633 = vadd.f32 %v632, 0.014752088
    %v634 = vmul.f32 %v618, %v633
    %v635 = vadd.f32 %v634, 0.112945676
    %v636 = vmul.f32 %v618, %v635
    %v637 = vadd.f32 %v636, 0.4994258
    %v638 = vmul.f32 %v618, %v637
    %v639 = vadd.f32 %v638, 1.0
    %v640 = vrcp.pop %v639
    %v641 = vmul.f32 %v639, %v640
    %v642 = vsub.f32 1.0, %v641
    %v643 = vmul.f32 %v640, %v642
    %v644 = vadd.f32 %v640, %v643
    %vm645 = vweird.f32 %v639
    %vm646 = vweird.f32 %v640
    %vm647 = vmor %vm645, %vm646
    %v648 = vsel %vm647, %v640, %v644
    %v649 = vand.u32 2147483647, %v639
    %vm650 = vcmp.eq.f32.partialorder %v649, 8.507059e+37
    %v651 = vand.u32 %v639, 2147483648
    %v652 = vor.u32 1.1754944e-38, %v651
    %v653 = vsel %vm650, %v652, %v648
    %v654 = vmul.f32 %v629, %v653
    %v655 = vmin.f32 %v654, 1.0
    %v656 = vmax.f32 %v655, -1.0
    %v657 = vadd.f32 %v376, 1.0
    %v658 = vadd.f32 %v416, 1.0
    %v659 = vadd.f32 %v456, 1.0
    %v660 = vadd.f32 %v496, 1.0
    %v661 = vadd.f32 %v536, 1.0
    %v662 = vadd.f32 %v576, 1.0
    %v663 = vadd.f32 %v616, 1.0
    %v664 = vadd.f32 %v656, 1.0
    %v665 = vmul.f32 %v321, %v657
    %v666 = vmul.f32 %v322, %v658
    %v667 = vmul.f32 %v323, %v659
    %v668 = vmul.f32 %v324, %v660
    %v669 = vmul.f32 %v325, %v661
    %v670 = vmul.f32 %v326, %v662
    %v671 = vmul.f32 %v327, %v663
    %v672 = vmul.f32 %v328, %v664
    %673 = vst [vmem:[#allocation8] sm:$0xff] %v665
    %674 = vst [vmem:[#allocation8 + $0x8] sm:$0xff] %v666
    %675 = vst [vmem:[#allocation8 + $0x10] sm:$0xff] %v667
    %676 = vst [vmem:[#allocation8 + $0x18] sm:$0xff] %v668
    %677 = vst [vmem:[#allocation8 + $0x20] sm:$0xff] %v669
    %678 = vst [vmem:[#allocation8 + $0x28] sm:$0xff] %v670
    %679 = vst [vmem:[#allocation8 + $0x30] sm:$0xff] %v671
    %680 = vst [vmem:[#allocation8 + $0x38] sm:$0xff] %v672
    // Predicated region
    $region26: #{tpu_custom_call.1} parent=1 // pred_check
      _
    $region27: #{tpu_custom_call.1} parent=1 // pred_check_branch
      %682 = sbr.rel (0) target = $region29
    $region28: #{tpu_custom_call.1} parent=1 // pred_region
      %684 = vsyncadd [#allocation4], 0
      %s685 = sshll.u32 [#allocation8], 4
      %s686 = int_to_ptr.vmem [resolvable:$true] %s685
      %s687 = sshll.u32 %s3, 4
      %s688 = int_to_ptr.hbm [resolvable:$true] %s687
      %693 = dma.vmem_to_hbm [thread:$0]  %s686, 1024, %s688, [#allocation4], 512, 512, 32
    $region29: #{tpu_custom_call.1} parent=1 // pred_fallthru
      _
    // Predicated region
    $region30: #{tpu_custom_call.1} parent=1 // pred_check
      _
    $region31: #{tpu_custom_call.1} parent=1 // pred_check_branch
      %695 = sbr.rel (0) target = $region33
    $region32: #{tpu_custom_call.1} parent=1 // pred_region
      %697 = dma.done [#allocation4], 1024
    $region33: #{tpu_custom_call.1} parent=1 // pred_fallthru
      _
    %698 = vsyncpa [#allocation3], 1
    %699 = vsyncpa [#allocation6], 1
    %700 = vsyncpa [#allocation4], 1

</llo_original>
